<compile_context>
chip_gen: v5e
topology: v5e:2x2
jax: 0.10.0
libtpu: 0.0.40
codegen_flags: <defaults>
</compile_context>

<pallas_src>
import numpy as np
import jax
import jax.numpy as jnp
from jax import lax
from jax.experimental import pallas as pl
from jax.experimental.pallas import tpu as pltpu

_EPS = 1e-5


def _moving_avg_matrix(num_steps: int, kernel_size: int) -> np.ndarray:
    """Linear operator equivalent to AvgPool1d(k, stride=1) with replicate padding.

    Matches the standard DLinear series_decomp (odd kernel_size: symmetric
    replicate padding of (k-1)//2 on each side).
    """
    pad = (kernel_size - 1) // 2
    m = np.zeros((num_steps, num_steps), dtype=np.float32)
    for t in range(num_steps):
        for i in range(kernel_size):
            j = min(max(t + i - pad, 0), num_steps - 1)
            m[t, j] += 1.0 / kernel_size
    return m


def _pick_batch_tile(B: int, L: int, C: int, T: int, itemsize: int) -> int:
    """Batches per grid step: VMEM-budget driven, with a megacore-only split gate."""
    try:
        kind = (jax.devices()[0].device_kind or "").lower()
    except Exception:
        kind = ""
    is_v5e = ("v5 lite" in kind) or ("v5e" in kind) or ("v5litepod" in kind)
    is_megacore = ("v7" in kind) or ("7x" in kind) or ("tpu7" in kind)  # 2 TCs/chip

    # Conservative per-step budget, well under the default scoped VMEM limit
    # (16 MiB on v5e, 32 MiB on v6e/v7x) so no vmem_limit_bytes override is needed.
    budget = (8 if is_v5e else 16) * 1024 * 1024

    # Per-batch resident bytes per step: double-buffered in/out blocks plus
    # f32 temporaries (x, d, xn, pred) that live briefly per loop iteration.
    per_batch = 2 * (L + T) * C * itemsize + 4 * (L + T) * C * 4
    bt = max(1, min(B, budget // max(per_batch, 1)))

    # v7x megacore: split the grid across the two TensorCores only when each
    # half still has >= ~512 columns of work.  On 1-TC chips (v5e/v6e) never
    # split just for "parallelism" -- a grid step is a serial loop iteration.
    if is_megacore and B >= 2 and (B // 2) * C >= 512:
        bt = min(bt, max(1, B // 2))
    return bt


def _make_dlinear_kernel(bt_block: int):
    unroll = bt_block <= 8

    def kernel(x_ref, w_ref, b_ref, out_ref):
        # x_ref:   [Bt, L, C]  native layout (series axis C on lanes)
        # w_ref:   [T, L]      fused seasonal+trend head
        # b_ref:   [T, 1]      fused bias
        # out_ref: [Bt, T, C]
        w = w_ref[...]
        b = b_ref[...]

        def one_batch(bi, carry):
            x = x_ref[bi].astype(jnp.float32)                 # [L, C]
            # --- Normalizer.normalize: per-series stats over time (axis 0) ---
            mean = jnp.mean(x, axis=0, keepdims=True)         # [1, C]
            d = x - mean                                      # centered (reused)
            var = jnp.mean(d * d, axis=0, keepdims=True)      # biased variance
            inv_std = lax.rsqrt(var + _EPS)                   # EUP op
            xn = d * inv_std                                  # [L, C]
            # --- decomposition + both heads fused into one MXU matmul ---
            pred = jnp.dot(w, xn, preferred_element_type=jnp.float32) + b   # [T, C]
            # --- Normalizer.denormalize ---
            std = (var + _EPS) * inv_std                      # == sqrt(var + eps)
            out_ref[bi] = (pred * std + mean).astype(out_ref.dtype)
            return carry

        lax.fori_loop(0, bt_block, one_batch, 0, unroll=unroll)

    return kernel


def dlinear_forward(time_series, ma_mat, w_seasonal, b_seasonal, w_trend, b_trend,
                    *, num_pred_steps, keep_num_pred_dim=False):
    B, L, C = time_series.shape
    T = w_seasonal.shape[0]
    itemsize = jnp.dtype(time_series.dtype).itemsize

    # Algebraic fusion (tiny wrapper-side matmul on [T,L] / [L,L] operands):
    #   pred = Ws@(xn - MA@xn) + Wt@(MA@xn) + bs + bt = W_eff @ xn + b_eff
    w_eff = (w_seasonal + (w_trend - w_seasonal) @ ma_mat).astype(jnp.float32)   # [T, L]
    b_eff = (b_seasonal + b_trend).astype(jnp.float32)                           # [T, 1]
    # TODO(synk): at realistic DLinear sizes (L=336-720, T=96-720) cast w_eff and
    # xn to bf16 for the MXU (keep stats/denorm in f32) for ~3-6x matmul throughput.

    bt = _pick_batch_tile(B, L, C, T, itemsize)
    grid = (pl.cdiv(B, bt),)

    cost = pl.CostEstimate(
        flops=int(B * C * (2 * T * L + 8 * L + 4 * T)),
        transcendentals=int(B * C),
        bytes_accessed=int((B * L * C + B * T * C) * itemsize + (T * L + T) * 4),
    )

    pred = pl.pallas_call(
        _make_dlinear_kernel(bt),
        out_shape=jax.ShapeDtypeStruct((B, T, C), time_series.dtype),
        grid_spec=pltpu.PrefetchScalarGridSpec(
            num_scalar_prefetch=0,
            grid=grid,
            in_specs=[
                pl.BlockSpec((bt, L, C), lambda i: (i, 0, 0)),   # native [B,L,C] layout
                pl.BlockSpec((T, L), lambda i: (0, 0)),          # fused weight (no re-DMA)
                pl.BlockSpec((T, 1), lambda i: (0, 0)),          # fused bias
            ],
            out_specs=pl.BlockSpec((bt, T, C), lambda i: (i, 0, 0)),
        ),
        compiler_params=pltpu.CompilerParams(dimension_semantics=("parallel",)),
        cost_estimate=cost,
    )(time_series, w_eff, b_eff)

    if num_pred_steps == 1 and not keep_num_pred_dim:
        pred = pred[:, 0, :]   # == pred.squeeze(dim=1)
    return pred


if __name__ == "__main__":
    # Synthetic DLinear config (is_individual=False, no exogenous vars).
    B = 2              # batch
    C = 8              # num_series
    L = 16             # num_steps
    T = 4              # num_pred_steps
    KERNEL = 5         # moving-average window (odd)
    keep_num_pred_dim = False

    key = jax.random.PRNGKey(0)
    k_x, k_ws, k_bs, k_wt, k_bt = jax.random.split(key, 5)

    time_series = jax.random.normal(k_x, (B, L, C), dtype=jnp.float32)

    # Deterministic parameter init (nn.Linear(num_steps, num_pred_steps)-shaped).
    scale = 1.0 / L
    w_seasonal = scale * jax.random.normal(k_ws, (T, L), dtype=jnp.float32)
    b_seasonal = scale * jax.random.normal(k_bs, (T, 1), dtype=jnp.float32)
    w_trend    = scale * jax.random.normal(k_wt, (T, L), dtype=jnp.float32)
    b_trend    = scale * jax.random.normal(k_bt, (T, 1), dtype=jnp.float32)

    ma_mat = jnp.asarray(_moving_avg_matrix(L, KERNEL))

    pred = dlinear_forward(
        time_series, ma_mat, w_seasonal, b_seasonal, w_trend, b_trend,
        num_pred_steps=T, keep_num_pred_dim=keep_num_pred_dim,
    )
    pred = jax.block_until_ready(pred)

    assert pred.shape == (B, T, C), pred.shape
    assert jnp.all(jnp.isfinite(pred))

    # Cross-check against a pure-JAX reference of the unfused forward pass.
    x = time_series.astype(jnp.float32)
    mean = jnp.mean(x, axis=1, keepdims=True)
    var = jnp.mean((x - mean) ** 2, axis=1, keepdims=True)
    std = jnp.sqrt(var + 1e-5)
    xn = (x - mean) / std
    trend = jnp.einsum('tl,blc->btc', ma_mat, xn)
    seasonal = xn - trend
    ref = (jnp.einsum('pl,blc->bpc', w_seasonal, seasonal) + b_seasonal[None]
           + jnp.einsum('pl,blc->bpc', w_trend, trend) + b_trend[None])
    ref = ref * std + mean
    np.testing.assert_allclose(np.asarray(pred), np.asarray(ref), rtol=1e-4, atol=1e-5)

    print("KERNEL_OK")
</pallas_src>

<mosaic_0001>
module attributes {stable_mosaic.version = 11 : i64} {
  func.func @kernel(%arg0: i32, %arg1: memref<2x16x8xf32, #tpu.memory_space<vmem>>, %arg2: memref<4x16xf32, #tpu.memory_space<vmem>>, %arg3: memref<4x1xf32, #tpu.memory_space<vmem>>, %arg4: memref<2x4x8xf32, #tpu.memory_space<vmem>>) attributes {dimension_semantics = [#tpu.dimension_semantics<parallel>], iteration_bounds = array<i64: 1>, scalar_prefetch = 0 : i64, scratch_operands = 0 : i64, tpu.core_type = #tpu.core_type<tc>, window_params = [{transform_indices = @transform_0, window_bounds = array<i64: 2, 16, 8>}, {pipeline_mode = #tpu.pipeline_mode<synchronous>, transform_indices = @transform_1, window_bounds = array<i64: 4, 16>}, {pipeline_mode = #tpu.pipeline_mode<synchronous>, transform_indices = @transform_2, window_bounds = array<i64: 4, 1>}, {transform_indices = @transform_3, window_bounds = array<i64: 2, 4, 8>}]} {
    %c0 = arith.constant 0 : index
    %c0_0 = arith.constant 0 : index
    %0 = vector.load %arg2[%c0, %c0_0] : memref<4x16xf32, #tpu.memory_space<vmem>>, vector<4x16xf32>
    %c0_1 = arith.constant 0 : index
    %c0_2 = arith.constant 0 : index
    %1 = vector.load %arg3[%c0_1, %c0_2] : memref<4x1xf32, #tpu.memory_space<vmem>>, vector<4x1xf32>
    %c0_i32 = arith.constant 0 : i32
    %2 = arith.index_cast %c0_i32 : i32 to index
    %c0_3 = arith.constant 0 : index
    %c0_4 = arith.constant 0 : index
    %3 = vector.load %arg1[%2, %c0_3, %c0_4] : memref<2x16x8xf32, #tpu.memory_space<vmem>>, vector<1x16x8xf32>
    %4 = vector.shape_cast %3 : vector<1x16x8xf32> to vector<16x8xf32>
    %cst = arith.constant dense<0.000000e+00> : vector<8xf32>
    %5 = vector.multi_reduction <add>, %4, %cst [0] : vector<16x8xf32> to vector<8xf32>
    %6 = vector.shape_cast %5 : vector<8xf32> to vector<1x8xf32>
    %cst_5 = arith.constant 1.600000e+01 : f32
    %7 = vector.broadcast %cst_5 : f32 to vector<1x8xf32>
    %8 = arith.divf %6, %7 : vector<1x8xf32>
    %9 = vector.broadcast %8 : vector<1x8xf32> to vector<16x8xf32>
    %10 = arith.subf %4, %9 : vector<16x8xf32>
    %11 = arith.mulf %10, %10 : vector<16x8xf32>
    %cst_6 = arith.constant dense<0.000000e+00> : vector<8xf32>
    %12 = vector.multi_reduction <add>, %11, %cst_6 [0] : vector<16x8xf32> to vector<8xf32>
    %13 = vector.shape_cast %12 : vector<8xf32> to vector<1x8xf32>
    %cst_7 = arith.constant 1.600000e+01 : f32
    %14 = vector.broadcast %cst_7 : f32 to vector<1x8xf32>
    %15 = arith.divf %13, %14 : vector<1x8xf32>
    %cst_8 = arith.constant 9.99999974E-6 : f32
    %16 = vector.broadcast %cst_8 : f32 to vector<1x8xf32>
    %17 = arith.addf %15, %16 : vector<1x8xf32>
    %18 = math.rsqrt %17 : vector<1x8xf32>
    %19 = vector.broadcast %18 : vector<1x8xf32> to vector<16x8xf32>
    %20 = arith.mulf %10, %19 : vector<16x8xf32>
    %cst_9 = arith.constant dense<0.000000e+00> : vector<4x8xf32>
    %21 = tpu.matmul %0, %20, %cst_9 {dimension_numbers = #tpu.dot_dimension_numbers<[1], [0], [0], [1], [0, 0, 1, 1], [], []>} : vector<4x16xf32>, vector<16x8xf32>, vector<4x8xf32> -> vector<4x8xf32>
    %22 = vector.broadcast %1 : vector<4x1xf32> to vector<4x8xf32>
    %23 = arith.addf %21, %22 : vector<4x8xf32>
    %cst_10 = arith.constant 9.99999974E-6 : f32
    %24 = vector.broadcast %cst_10 : f32 to vector<1x8xf32>
    %25 = arith.addf %15, %24 : vector<1x8xf32>
    %26 = arith.mulf %25, %18 : vector<1x8xf32>
    %27 = vector.broadcast %26 : vector<1x8xf32> to vector<4x8xf32>
    %28 = arith.mulf %23, %27 : vector<4x8xf32>
    %29 = vector.broadcast %8 : vector<1x8xf32> to vector<4x8xf32>
    %30 = arith.addf %28, %29 : vector<4x8xf32>
    %31 = arith.index_cast %c0_i32 : i32 to index
    %c0_11 = arith.constant 0 : index
    %c0_12 = arith.constant 0 : index
    %32 = vector.load %arg4[%31, %c0_11, %c0_12] : memref<2x4x8xf32, #tpu.memory_space<vmem>>, vector<1x4x8xf32>
    %33 = vector.shape_cast %32 : vector<1x4x8xf32> to vector<4x8xf32>
    %34 = vector.shape_cast %30 : vector<4x8xf32> to vector<1x4x8xf32>
    tpu.vector_store %arg4[%31, %c0_11, %c0_12], %34 {strides = array<i32>} : memref<2x4x8xf32, #tpu.memory_space<vmem>>, vector<1x4x8xf32>,
    %c1_i32 = arith.constant 1 : i32
    %35 = arith.index_cast %c1_i32 : i32 to index
    %c0_13 = arith.constant 0 : index
    %c0_14 = arith.constant 0 : index
    %36 = vector.load %arg1[%35, %c0_13, %c0_14] : memref<2x16x8xf32, #tpu.memory_space<vmem>>, vector<1x16x8xf32>
    %37 = vector.shape_cast %36 : vector<1x16x8xf32> to vector<16x8xf32>
    %cst_15 = arith.constant dense<0.000000e+00> : vector<8xf32>
    %38 = vector.multi_reduction <add>, %37, %cst_15 [0] : vector<16x8xf32> to vector<8xf32>
    %39 = vector.shape_cast %38 : vector<8xf32> to vector<1x8xf32>
    %cst_16 = arith.constant 1.600000e+01 : f32
    %40 = vector.broadcast %cst_16 : f32 to vector<1x8xf32>
    %41 = arith.divf %39, %40 : vector<1x8xf32>
    %42 = vector.broadcast %41 : vector<1x8xf32> to vector<16x8xf32>
    %43 = arith.subf %37, %42 : vector<16x8xf32>
    %44 = arith.mulf %43, %43 : vector<16x8xf32>
    %cst_17 = arith.constant dense<0.000000e+00> : vector<8xf32>
    %45 = vector.multi_reduction <add>, %44, %cst_17 [0] : vector<16x8xf32> to vector<8xf32>
    %46 = vector.shape_cast %45 : vector<8xf32> to vector<1x8xf32>
    %cst_18 = arith.constant 1.600000e+01 : f32
    %47 = vector.broadcast %cst_18 : f32 to vector<1x8xf32>
    %48 = arith.divf %46, %47 : vector<1x8xf32>
    %cst_19 = arith.constant 9.99999974E-6 : f32
    %49 = vector.broadcast %cst_19 : f32 to vector<1x8xf32>
    %50 = arith.addf %48, %49 : vector<1x8xf32>
    %51 = math.rsqrt %50 : vector<1x8xf32>
    %52 = vector.broadcast %51 : vector<1x8xf32> to vector<16x8xf32>
    %53 = arith.mulf %43, %52 : vector<16x8xf32>
    %cst_20 = arith.constant dense<0.000000e+00> : vector<4x8xf32>
    %54 = tpu.matmul %0, %53, %cst_20 {dimension_numbers = #tpu.dot_dimension_numbers<[1], [0], [0], [1], [0, 0, 1, 1], [], []>} : vector<4x16xf32>, vector<16x8xf32>, vector<4x8xf32> -> vector<4x8xf32>
    %55 = vector.broadcast %1 : vector<4x1xf32> to vector<4x8xf32>
    %56 = arith.addf %54, %55 : vector<4x8xf32>
    %cst_21 = arith.constant 9.99999974E-6 : f32
    %57 = vector.broadcast %cst_21 : f32 to vector<1x8xf32>
    %58 = arith.addf %48, %57 : vector<1x8xf32>
    %59 = arith.mulf %58, %51 : vector<1x8xf32>
    %60 = vector.broadcast %59 : vector<1x8xf32> to vector<4x8xf32>
    %61 = arith.mulf %56, %60 : vector<4x8xf32>
    %62 = vector.broadcast %41 : vector<1x8xf32> to vector<4x8xf32>
    %63 = arith.addf %61, %62 : vector<4x8xf32>
    %64 = arith.index_cast %c1_i32 : i32 to index
    %c0_22 = arith.constant 0 : index
    %c0_23 = arith.constant 0 : index
    %65 = vector.load %arg4[%64, %c0_22, %c0_23] : memref<2x4x8xf32, #tpu.memory_space<vmem>>, vector<1x4x8xf32>
    %66 = vector.shape_cast %65 : vector<1x4x8xf32> to vector<4x8xf32>
    %67 = vector.shape_cast %63 : vector<4x8xf32> to vector<1x4x8xf32>
    tpu.vector_store %arg4[%64, %c0_22, %c0_23], %67 {strides = array<i32>} : memref<2x4x8xf32, #tpu.memory_space<vmem>>, vector<1x4x8xf32>,
    %c2_i32 = arith.constant 2 : i32
    return
  }
  func.func @transform_0(%arg0: i32) -> (i32, i32, i32) {
    %c0_i32 = arith.constant 0 : i32
    %c0_i32_0 = arith.constant 0 : i32
    %c0_i32_1 = arith.constant 0 : i32
    return %arg0, %c0_i32, %c0_i32_0 : i32, i32, i32
  }
  func.func @transform_1(%arg0: i32) -> (i32, i32) {
    %c0_i32 = arith.constant 0 : i32
    %c0_i32_0 = arith.constant 0 : i32
    %c0_i32_1 = arith.constant 0 : i32
    return %c0_i32, %c0_i32_0 : i32, i32
  }
  func.func @transform_2(%arg0: i32) -> (i32, i32) {
    %c0_i32 = arith.constant 0 : i32
    %c0_i32_0 = arith.constant 0 : i32
    %c0_i32_1 = arith.constant 0 : i32
    return %c0_i32, %c0_i32_0 : i32, i32
  }
  func.func @transform_3(%arg0: i32) -> (i32, i32, i32) {
    %c0_i32 = arith.constant 0 : i32
    %c0_i32_0 = arith.constant 0 : i32
    %c0_i32_1 = arith.constant 0 : i32
    return %arg0, %c0_i32, %c0_i32_0 : i32, i32, i32
  }
}

</mosaic_0001>

<llo_original>
// kernel: tpu_custom_call.1
$region0: #{tpu_custom_call.1}
  #allocation0 [shape = 'u32[]', space=smem, size = 0x4, offset = 0x4, fixed_abs, tag = 'smem constant byte address 0x4 - core index']
  #allocation1 [shape = 'u32[72,128]{1,0:T(1,128)}', space=vmem, size = 0x9000, scoped, tag = 'internal scratch']
  %s0 = inlined_call_operand.vmem [shape: f32[2,16,8], index: 0, kind: input, shape index: {}]
  %s1 = inlined_call_operand.vmem [shape: f32[4,16], index: 1, kind: input, shape index: {}]
  %s2 = inlined_call_operand.vmem [shape: f32[4,1], index: 2, kind: input, shape index: {}]
  %s3 = inlined_call_operand.hbm [shape: f32[2,4,8], index: 3, kind: output, shape index: {}]
  %s4 = sld [smem:[#allocation0]]
  $region22: #{tpu_custom_call.1} parent=0
    _
  %s6 = ssub.s32 1, %s4
  %s7 = scalar_select 0, %s6, %s4
  $region1: #{tpu_custom_call.1} parent=0
    #allocation2 [shape = 'u8[4096]{0}', space=vmem, size = 0x1000, scoped, tag = 'output window, operand 0, single buffered']
    #allocation3 [shape = 's32[1]{0}', space=sflag, size = 0x4, scoped, tag = 'scoped memory for tpu_custom_call.1']
    %8 = vsyncpa [#allocation3], 0
    // Predicated region
    $region2: #{tpu_custom_call.1} parent=1 // pred_check
      _
    $region3: #{tpu_custom_call.1} parent=1 // pred_check_branch
      %10 = sbr.rel (0) target = $region5
    $region4: #{tpu_custom_call.1} parent=1 // pred_region
      _
    $region5: #{tpu_custom_call.1} parent=1 // pred_fallthru
      _
    // Predicated region
    $region6: #{tpu_custom_call.1} parent=1 // pred_check
      _
    $region7: #{tpu_custom_call.1} parent=1 // pred_check_branch
      %12 = sbr.rel (0) target = $region9
    $region8: #{tpu_custom_call.1} parent=1 // pred_region
      _
    $region9: #{tpu_custom_call.1} parent=1 // pred_fallthru
      _
    // Predicated region
    $region10: #{tpu_custom_call.1} parent=1 // pred_check
      _
    $region11: #{tpu_custom_call.1} parent=1 // pred_check_branch
      %14 = sbr.rel (0) target = $region13
    $region12: #{tpu_custom_call.1} parent=1 // pred_region
      _
    $region13: #{tpu_custom_call.1} parent=1 // pred_fallthru
      _
    %v15 = vld [vmem:[%s1] sm:$0xf]
    %v16 = vld [vmem:[%s2] sm:$0xf]
    %v17 = vld [vmem:[%s0] sm:$0xff]
    %v18 = vld [vmem:[%s0 + $0x8] sm:$0xff]
    %vm19 = vcmask 64512
    %v20 = vsel %vm19, %v17, 0.0
    %v21 = vsel %vm19, %v18, 0.0
    %v22 = vadd.f32 %v20, %v21
    %v23 = vrot.slane %v22, 4
    %v24 = vadd.f32 %v22, %v23
    %v25 = vrot.slane %v24, 2
    %v26 = vadd.f32 %v24, %v25
    %v27 = vrot.slane %v26, 1
    %v28 = vadd.f32 %v26, %v27
    %v29 = vrcp.pop 16.0
    %v30 = vmul.f32 16.0, %v29
    %v31 = vsub.f32 1.0, %v30
    %v32 = vmul.f32 %v29, %v31
    %v33 = vadd.f32 %v29, %v32
    %vm34 = vweird.f32 %v29
    %v35 = vsel %vm34, %v29, %v33
    %v36 = vmul.f32 %v28, %v35
    %v37 = vsub.f32 %v17, %v36
    %v38 = vsub.f32 %v18, %v36
    %v39 = vmul.f32 %v37, %v37
    %v40 = vmul.f32 %v38, %v38
    %v41 = vsel %vm19, %v39, 0.0
    %v42 = vsel %vm19, %v40, 0.0
    %v43 = vadd.f32 %v41, %v42
    %v44 = vrot.slane %v43, 4
    %v45 = vadd.f32 %v43, %v44
    %v46 = vrot.slane %v45, 2
    %v47 = vadd.f32 %v45, %v46
    %v48 = vrot.slane %v47, 1
    %v49 = vadd.f32 %v47, %v48
    %v50 = vmul.f32 %v49, %v35
    %v51 = vadd.f32 %v50, 1e-05
    %v52 = vrsqrt.pop %v51
    %v53 = vmul.f32 %v52, %v51
    %v54 = vmul.f32 %v53, %v52
    %v55 = vmul.f32 0.5, %v54
    %v56 = vsub.f32 1.5, %v55
    %v57 = vmul.f32 %v52, %v56
    %vm58 = vweird.f32 %v51
    %vm59 = vweird.f32 %v52
    %vm60 = vmor %vm58, %vm59
    %v61 = vsel %vm60, %v52, %v57
    %v62 = vmul.f32 %v37, %v61
    %v63 = vmul.f32 %v38, %v61
    %65 = vset.pattern.permute.xlu0 0
    %66 = vperm.xlu0 %65, %v16
    %v67 = vpop.permute.xlu0 %66
    %vm69 = vcmask 130048
    %v71 = vsel %vm69, %v15, 0
    %73 = vmatpush.msra.mxu0 0.0
    %74 = vmatpush.msra.mxu0 0.0
    %75 = vmatpush.msra.mxu0 0.0
    %76 = vmatpush.msra.mxu0 0.0
    %77 = vmatpush.msra.mxu0 0.0
    %78 = vmatpush.msra.mxu0 0.0
    %79 = vmatpush.msra.mxu0 0.0
    %80 = vmatpush.msra.mxu0 0.0
    %81 = vmatpush.msra.mxu0 0.0
    %82 = vmatpush.msra.mxu0 0.0
    %83 = vmatpush.msra.mxu0 0.0
    %84 = vmatpush.msra.mxu0 0.0
    %85 = vmatpush.msra.mxu0 0.0
    %86 = vmatpush.msra.mxu0 0.0
    %87 = vmatpush.msra.mxu0 %v63
    %88 = vmatpush.msra.mxu0 %v62
    %89 = vmatmul.f32.gmra.mxu0 %v71
    %v90 = vpop.f32.mrf.mxu0
    %v91 = vadd.f32 %v67, %v90
    %92 = vdwg.mxu0
    %v93 = vmul.f32 %v51, %v61
    %v94 = vmul.f32 %v91, %v93
    %v95 = vadd.f32 %v94, %v36
    %vm96 = vcmask 60416
    %97 = vst.msk [vmem:[#allocation2] sm:$0xf] %vm96, %v95
    %s98 = scalar_lea.vmem %s0, 16
    %v99 = vld [vmem:[%s98] sm:$0xff]
    %v100 = vld [vmem:[%s98 + $0x8] sm:$0xff]
    %v101 = vsel %vm19, %v99, 0.0
    %v102 = vsel %vm19, %v100, 0.0
    %v103 = vadd.f32 %v101, %v102
    %v104 = vrot.slane %v103, 4
    %v105 = vadd.f32 %v103, %v104
    %v106 = vrot.slane %v105, 2
    %v107 = vadd.f32 %v105, %v106
    %v108 = vrot.slane %v107, 1
    %v109 = vadd.f32 %v107, %v108
    %v110 = vmul.f32 %v109, %v35
    %v111 = vsub.f32 %v99, %v110
    %v112 = vsub.f32 %v100, %v110
    %v113 = vmul.f32 %v111, %v111
    %v114 = vmul.f32 %v112, %v112
    %v115 = vsel %vm19, %v113, 0.0
    %v116 = vsel %vm19, %v114, 0.0
    %v117 = vadd.f32 %v115, %v116
    %v118 = vrot.slane %v117, 4
    %v119 = vadd.f32 %v117, %v118
    %v120 = vrot.slane %v119, 2
    %v121 = vadd.f32 %v119, %v120
    %v122 = vrot.slane %v121, 1
    %v123 = vadd.f32 %v121, %v122
    %v124 = vmul.f32 %v123, %v35
    %v125 = vadd.f32 %v124, 1e-05
    %v126 = vrsqrt.pop %v125
    %v127 = vmul.f32 %v126, %v125
    %v128 = vmul.f32 %v127, %v126
    %v129 = vmul.f32 0.5, %v128
    %v130 = vsub.f32 1.5, %v129
    %v131 = vmul.f32 %v126, %v130
    %vm132 = vweird.f32 %v125
    %vm133 = vweird.f32 %v126
    %vm134 = vmor %vm132, %vm133
    %v135 = vsel %vm134, %v126, %v131
    %v136 = vmul.f32 %v111, %v135
    %v137 = vmul.f32 %v112, %v135
    %138 = vmatpush.msra.mxu0 0.0
    %139 = vmatpush.msra.mxu0 0.0
    %140 = vmatpush.msra.mxu0 0.0
    %141 = vmatpush.msra.mxu0 0.0
    %142 = vmatpush.msra.mxu0 0.0
    %143 = vmatpush.msra.mxu0 0.0
    %144 = vmatpush.msra.mxu0 0.0
    %145 = vmatpush.msra.mxu0 0.0
    %146 = vmatpush.msra.mxu0 0.0
    %147 = vmatpush.msra.mxu0 0.0
    %148 = vmatpush.msra.mxu0 0.0
    %149 = vmatpush.msra.mxu0 0.0
    %150 = vmatpush.msra.mxu0 0.0
    %151 = vmatpush.msra.mxu0 0.0
    %152 = vmatpush.msra.mxu0 %v137
    %153 = vmatpush.msra.mxu0 %v136
    %154 = vmatmul.f32.gmra.mxu0 %v71
    %v155 = vpop.f32.mrf.mxu0
    %v156 = vadd.f32 %v67, %v155
    %157 = vdwg.mxu0
    %v158 = vmul.f32 %v125, %v135
    %v159 = vmul.f32 %v156, %v158
    %v160 = vadd.f32 %v159, %v110
    %s161 = scalar_lea.vmem [#allocation2], 4
    %162 = vst.msk [vmem:[%s161] sm:$0xf] %vm96, %v160
    // Predicated region
    $region14: #{tpu_custom_call.1} parent=1 // pred_check
      _
    $region15: #{tpu_custom_call.1} parent=1 // pred_check_branch
      %164 = sbr.rel (0) target = $region17
    $region16: #{tpu_custom_call.1} parent=1 // pred_region
      %166 = vsyncadd [#allocation3], 0
      %s167 = sshll.u32 [#allocation2], 4
      %s168 = int_to_ptr.vmem [resolvable:$true] %s167
      %s169 = sshll.u32 %s3, 4
      %s170 = int_to_ptr.hbm [resolvable:$true] %s169
      %175 = dma.vmem_to_hbm [thread:$0]  %s168, 128, %s170, [#allocation3], 64, 64, 4
    $region17: #{tpu_custom_call.1} parent=1 // pred_fallthru
      _
    // Predicated region
    $region18: #{tpu_custom_call.1} parent=1 // pred_check
      _
    $region19: #{tpu_custom_call.1} parent=1 // pred_check_branch
      %177 = sbr.rel (0) target = $region21
    $region20: #{tpu_custom_call.1} parent=1 // pred_region
      %179 = dma.done [#allocation3], 128
    $region21: #{tpu_custom_call.1} parent=1 // pred_fallthru
      _
    %180 = vsyncpa [#allocation3], 1

</llo_original>
